<compile_context>
chip_gen: v6e
topology: v6e:2x2x1
jax: 0.10.0
libtpu: 0.0.40
codegen_flags: <defaults>
</compile_context>

<pallas_src>
import math

import jax
import jax.numpy as jnp
from jax.experimental import pallas as pl
from jax.experimental.pallas import tpu as pltpu


def _modulation_kernel(x_ref, scale_ref, bias_ref, o_ref):
    """o = x * scale + bias, streamed.

    x_ref:     (R, T)  lane-dense tile (rows = flattened (n, c))
    scale_ref: (R, 1)  f32 per-row scale (lane-broadcast)
    bias_ref:  (R, 1)  f32 per-row bias  (lane-broadcast)
    o_ref:     (R, T)
    """
    o_ref[...] = (x_ref[...] * scale_ref[...] + bias_ref[...]).astype(o_ref.dtype)


def _round_up(a, b):
    return ((a + b - 1) // b) * b


def _choose_tiling(nr, hw, itemsize, target_bytes=6 << 20, max_tile_bytes=8 << 20):
    """Pick (R, T, nr_pad, hw_pad) for the (nr, hw) flattened activation.

    T is a multiple of 128 dividing hw_pad; R is either the full row extent
    (legal even when not a multiple of the packing factor) or a multiple of
    the dtype packing factor when rows must be tiled.
    """
    pack = max(8, 32 // itemsize)               # 8 (f32) / 16 (bf16) / 32 (int8)
    hw_pad = _round_up(max(hw, 1), 128)

    # Row tile: keep all rows unless one 128-lane column of all rows already
    # exceeds the tile budget.
    if nr * 128 * itemsize <= max_tile_bytes:
        r = nr
        nr_pad = nr
    else:
        r = max(pack, (target_bytes // (128 * itemsize)) // pack * pack)
        nr_pad = _round_up(nr, r)

    # Lane tile: divisor of hw_pad (in 128-lane units) whose tile size is
    # closest to the byte target without exceeding the hard cap.
    units = hw_pad // 128
    best_t, best_score = 128, None
    d = 1
    while d * d <= units:
        if units % d == 0:
            for u in (d, units // d):
                t = u * 128
                tb = r * t * itemsize
                if tb > max_tile_bytes:
                    continue
                score = abs(tb - target_bytes)
                if best_score is None or score < best_score:
                    best_t, best_score = t, score
        d += 1
    return r, best_t, nr_pad, hw_pad


def generator_modulation(x, style, w_scale, b_scale, w_bias, b_bias):
    """x: (N, C, H, W); style: (N, S).
    w_scale/w_bias: (C, S) PyTorch-layout weights; b_scale/b_bias: (C,)."""
    if style.ndim > 2:
        # TODO(synk): spatial style map branch (bilinear interpolate + per-pixel
        # EqualLinear) is not implemented.
        raise NotImplementedError("style.ndim > 2 branch not implemented")

    N, C, H, W = x.shape
    S = style.shape[1]
    eq = 1.0 / math.sqrt(S)          # EqualLinear scale (lr_mul = 1)

    # EqualLinear hoisted out of the grid loop: one tiny (N,S)x(S,C) f32 dot
    # per branch, eq folded into the weights.
    stylef = style.astype(jnp.float32)
    scale = stylef @ (jnp.asarray(w_scale, jnp.float32) * eq).T \
        + jnp.asarray(b_scale, jnp.float32)                       # (N, C) f32
    bias = stylef @ (jnp.asarray(w_bias, jnp.float32) * eq).T \
        + jnp.asarray(b_bias, jnp.float32)                        # (N, C) f32

    dtype = x.dtype
    itemsize = jnp.dtype(dtype).itemsize

    NR = N * C
    HW = H * W
    R, T, NR_pad, HW_pad = _choose_tiling(NR, HW, itemsize)

    # Flatten to (rows, lanes) and pad so the tiles divide evenly.
    x2 = x.reshape(NR, HW)
    if NR_pad != NR or HW_pad != HW:
        x2 = jnp.pad(x2, ((0, NR_pad - NR), (0, HW_pad - HW)))
    scale2 = scale.reshape(NR, 1)
    bias2 = bias.reshape(NR, 1)
    if NR_pad != NR:
        scale2 = jnp.pad(scale2, ((0, NR_pad - NR), (0, 0)))
        bias2 = jnp.pad(bias2, ((0, NR_pad - NR), (0, 0)))

    num_rt = NR_pad // R
    num_sp = HW_pad // T

    tile_bytes = R * T * itemsize
    # 2 buffers x (in + out) tiles + scale/bias + slack, capped for v7x VMEM.
    vmem_limit = int(min(48 << 20, max(32 << 20, 6 * tile_bytes)))

    out_flat = pl.pallas_call(
        _modulation_kernel,
        out_shape=jax.ShapeDtypeStruct((NR_pad, HW_pad), dtype),
        grid_spec=pltpu.PrefetchScalarGridSpec(
            num_scalar_prefetch=0,
            grid=(num_sp, num_rt),                                   # spatial axis leading
            in_specs=[
                pl.BlockSpec((R, T), lambda s, r: (r, s)),           # x tile
                pl.BlockSpec((R, 1), lambda s, r: (r, 0)),           # scale (f32)
                pl.BlockSpec((R, 1), lambda s, r: (r, 0)),           # bias  (f32)
            ],
            out_specs=pl.BlockSpec((R, T), lambda s, r: (r, s)),
        ),
        compiler_params=pltpu.CompilerParams(
            dimension_semantics=("parallel", "parallel"),
            vmem_limit_bytes=vmem_limit),
    )(x2, scale2, bias2)

    return out_flat[:NR, :HW].reshape(N, C, H, W)


def _reference(x, style, w_scale, b_scale, w_bias, b_bias):
    S = style.shape[1]
    eq = 1.0 / math.sqrt(S)
    scale = style @ (w_scale * eq).T + b_scale     # (N, C)
    bias = style @ (w_bias * eq).T + b_bias        # (N, C)
    return x * scale[:, :, None, None] + bias[:, :, None, None]


if __name__ == "__main__":
    # Small shapes consistent with the module: N=2, outch=4, H=W=16, styledim=8
    N, C, H, W, S = 2, 4, 16, 16, 8

    key = jax.random.PRNGKey(0)
    kx, ks, kw1, kw2 = jax.random.split(key, 4)

    x = jax.random.normal(kx, (N, C, H, W), dtype=jnp.float32)
    style = jax.random.normal(ks, (N, S), dtype=jnp.float32)

    # EqualLinear init: weight = randn(out, in) / lr_mul (lr_mul = 1), bias = zeros.
    w_scale = jax.random.normal(kw1, (C, S), dtype=jnp.float32)
    b_scale = jnp.zeros((C,), dtype=jnp.float32)
    w_bias = jax.random.normal(kw2, (C, S), dtype=jnp.float32)
    b_bias = jnp.zeros((C,), dtype=jnp.float32)

    out = generator_modulation(x, style, w_scale, b_scale, w_bias, b_bias)
    out = jax.block_until_ready(out)

    ref = _reference(x, style, w_scale, b_scale, w_bias, b_bias)
    assert out.shape == (N, C, H, W)
    assert jnp.allclose(out, ref, atol=1e-5, rtol=1e-5), "mismatch vs reference"

    print("KERNEL_OK")
</pallas_src>

<mosaic_0001>
module attributes {stable_mosaic.version = 11 : i64} {
  func.func @_modulation_kernel(%arg0: i32, %arg1: i32, %arg2: memref<8x256xf32, #tpu.memory_space<vmem>>, %arg3: memref<8x1xf32, #tpu.memory_space<vmem>>, %arg4: memref<8x1xf32, #tpu.memory_space<vmem>>, %arg5: memref<8x256xf32, #tpu.memory_space<vmem>>) attributes {dimension_semantics = [#tpu.dimension_semantics<parallel>, #tpu.dimension_semantics<parallel>], iteration_bounds = array<i64: 1, 1>, scalar_prefetch = 0 : i64, scratch_operands = 0 : i64, tpu.core_type = #tpu.core_type<tc>, window_params = [{transform_indices = @transform_0, window_bounds = array<i64: 8, 256>}, {transform_indices = @transform_1, window_bounds = array<i64: 8, 1>}, {transform_indices = @transform_2, window_bounds = array<i64: 8, 1>}, {transform_indices = @transform_3, window_bounds = array<i64: 8, 256>}]} {
    %c0 = arith.constant 0 : index
    %c0_0 = arith.constant 0 : index
    %0 = vector.load %arg2[%c0, %c0_0] : memref<8x256xf32, #tpu.memory_space<vmem>>, vector<8x256xf32>
    %c0_1 = arith.constant 0 : index
    %c0_2 = arith.constant 0 : index
    %1 = vector.load %arg3[%c0_1, %c0_2] : memref<8x1xf32, #tpu.memory_space<vmem>>, vector<8x1xf32>
    %2 = vector.broadcast %1 : vector<8x1xf32> to vector<8x256xf32>
    %3 = arith.mulf %0, %2 : vector<8x256xf32>
    %c0_3 = arith.constant 0 : index
    %c0_4 = arith.constant 0 : index
    %4 = vector.load %arg4[%c0_3, %c0_4] : memref<8x1xf32, #tpu.memory_space<vmem>>, vector<8x1xf32>
    %5 = vector.broadcast %4 : vector<8x1xf32> to vector<8x256xf32>
    %6 = arith.addf %3, %5 : vector<8x256xf32>
    %c0_5 = arith.constant 0 : index
    %c0_6 = arith.constant 0 : index
    %7 = vector.load %arg5[%c0_5, %c0_6] : memref<8x256xf32, #tpu.memory_space<vmem>>, vector<8x256xf32>
    tpu.vector_store %arg5[%c0_5, %c0_6], %6 {strides = array<i32>} : memref<8x256xf32, #tpu.memory_space<vmem>>, vector<8x256xf32>,
    return
  }
  func.func @transform_0(%arg0: i32, %arg1: i32) -> (i32, i32) {
    %c0_i32 = arith.constant 0 : i32
    return %arg1, %arg0 : i32, i32
  }
  func.func @transform_1(%arg0: i32, %arg1: i32) -> (i32, i32) {
    %c0_i32 = arith.constant 0 : i32
    %c0_i32_0 = arith.constant 0 : i32
    return %arg1, %c0_i32 : i32, i32
  }
  func.func @transform_2(%arg0: i32, %arg1: i32) -> (i32, i32) {
    %c0_i32 = arith.constant 0 : i32
    %c0_i32_0 = arith.constant 0 : i32
    return %arg1, %c0_i32 : i32, i32
  }
  func.func @transform_3(%arg0: i32, %arg1: i32) -> (i32, i32) {
    %c0_i32 = arith.constant 0 : i32
    return %arg1, %arg0 : i32, i32
  }
}

</mosaic_0001>

<llo_original>
// kernel: tpu_custom_call.1
$region0: #{tpu_custom_call.1}
  #allocation0 [shape = 'u32[]', space=smem, size = 0x4, offset = 0x4, fixed_abs, tag = 'smem constant byte address 0x4 - core index']
  #allocation1 [shape = 'u32[144,128]{1,0:T(1,128)}', space=vmem, size = 0x12000, scoped, tag = 'internal scratch']
  %s0 = inlined_call_operand.vmem [shape: f32[8,256], index: 0, kind: input, shape index: {}]
  %s1 = inlined_call_operand.vmem [shape: f32[8,1], index: 1, kind: input, shape index: {}]
  %s2 = inlined_call_operand.vmem [shape: f32[8,1], index: 2, kind: input, shape index: {}]
  %s3 = inlined_call_operand.hbm [shape: f32[8,256], index: 3, kind: output, shape index: {}]
  %s4 = sld [smem:[#allocation0]]
  $region22: #{tpu_custom_call.1} parent=0
    _
  %s6 = ssub.s32 1, %s4
  %s7 = scalar_select 0, %s6, %s4
  $region1: #{tpu_custom_call.1} parent=0
    #allocation2 [shape = 'u8[8192]{0}', space=vmem, size = 0x2000, scoped, tag = 'output window, operand 0, single buffered']
    #allocation3 [shape = 's32[1]{0}', space=sflag, size = 0x4, scoped, tag = 'scoped memory for tpu_custom_call.1']
    %8 = vsyncpa [#allocation3], 0
    // Predicated region
    $region2: #{tpu_custom_call.1} parent=1 // pred_check
      _
    $region3: #{tpu_custom_call.1} parent=1 // pred_check_branch
      %10 = sbr.rel (0) target = $region5
    $region4: #{tpu_custom_call.1} parent=1 // pred_region
      _
    $region5: #{tpu_custom_call.1} parent=1 // pred_fallthru
      _
    // Predicated region
    $region6: #{tpu_custom_call.1} parent=1 // pred_check
      _
    $region7: #{tpu_custom_call.1} parent=1 // pred_check_branch
      %12 = sbr.rel (0) target = $region9
    $region8: #{tpu_custom_call.1} parent=1 // pred_region
      _
    $region9: #{tpu_custom_call.1} parent=1 // pred_fallthru
      _
    // Predicated region
    $region10: #{tpu_custom_call.1} parent=1 // pred_check
      _
    $region11: #{tpu_custom_call.1} parent=1 // pred_check_branch
      %14 = sbr.rel (0) target = $region13
    $region12: #{tpu_custom_call.1} parent=1 // pred_region
      _
    $region13: #{tpu_custom_call.1} parent=1 // pred_fallthru
      _
    %v15 = vld [vmem:[%s0] sm:$0xff]
    %v16 = vld [vmem:[%s0 + $0x8] sm:$0xff]
    %v17 = vld [vmem:[%s1] sm:$0xff]
    %19 = vset.pattern.permute.xlu0 0
    %20 = vperm.xlu0 %19, %v17
    %v21 = vpop.permute.xlu0 %20
    %v23 = vmul.f32 %v15, %v21
    %v24 = vmul.f32 %v16, %v21
    %v25 = vld [vmem:[%s2] sm:$0xff]
    %27 = vset.pattern.permute.xlu0 0
    %28 = vperm.xlu0 %27, %v25
    %v29 = vpop.permute.xlu0 %28
    %v31 = vadd.f32 %v23, %v29
    %v32 = vadd.f32 %v24, %v29
    %33 = vst [vmem:[#allocation2] sm:$0xff] %v31
    %34 = vst [vmem:[#allocation2 + $0x8] sm:$0xff] %v32
    // Predicated region
    $region14: #{tpu_custom_call.1} parent=1 // pred_check
      _
    $region15: #{tpu_custom_call.1} parent=1 // pred_check_branch
      %36 = sbr.rel (0) target = $region17
    $region16: #{tpu_custom_call.1} parent=1 // pred_region
      %s38 = ssub.s32 256, 256
      %39 = vsyncadd [#allocation3], %s38
      %s41 = sshll.u32 [#allocation2], 4
      %s42 = int_to_ptr.vmem [resolvable:$true] %s41
      %44 = dma.vmem_to_hbm [thread:$0]  %s42, 256, %s3, [#allocation3]
    $region17: #{tpu_custom_call.1} parent=1 // pred_fallthru
      _
    // Predicated region
    $region18: #{tpu_custom_call.1} parent=1 // pred_check
      _
    $region19: #{tpu_custom_call.1} parent=1 // pred_check_branch
      %46 = sbr.rel (0) target = $region21
    $region20: #{tpu_custom_call.1} parent=1 // pred_region
      %47 = dma.done [#allocation3], 256
    $region21: #{tpu_custom_call.1} parent=1 // pred_fallthru
      _
    %48 = vsyncpa [#allocation3], 1

</llo_original>
